<compile_context>
chip_gen: v6e
topology: v6e:2x2x1
jax: 0.10.0
libtpu: 0.0.40
codegen_flags: <defaults>
</compile_context>

<pallas_src>
import jax
import jax.numpy as jnp
from jax.experimental import pallas as pl
from jax.experimental.pallas import tpu as pltpu


# ---------------------------------------------------------------------------
# Per-generation VMEM budgeting / tiling helpers
# ---------------------------------------------------------------------------
_V7X_VMEM_BYTES = 64 * 1024 * 1024  # most restrictive generation (per TensorCore)


def _round_up(x: int, m: int) -> int:
    return ((x + m - 1) // m) * m


def _vmem_limit_bytes() -> int:
    """3/4 of this chip's VMEM capacity, clamped; v7x-safe fallback."""
    try:
        cap = int(getattr(pltpu.get_tpu_info(), "vmem_capacity_bytes",
                          _V7X_VMEM_BYTES))
    except Exception:  # query unavailable (e.g. interpret mode)
        cap = _V7X_VMEM_BYTES
    return max(16 * 1024 * 1024, min(96 * 1024 * 1024, (cap * 3) // 4))


def _pick_row_tile(n_rows: int, row_bytes: int, *, budget_bytes: int,
                   max_tile: int, align: int) -> int:
    """Largest `align`-multiple row tile whose double-buffered block fits budget."""
    by_budget = budget_bytes // (2 * max(1, row_bytes))
    t = min(max_tile, max(align, by_budget), _round_up(max(n_rows, 1), align))
    t = max(align, (t // align) * align)
    # Keep >= 2 grid steps when there's enough work so the ("parallel",) grid
    # can shard across both TensorCores on v7x.
    if n_rows > 256 and pl.cdiv(n_rows, t) < 2:
        t = max(align, _round_up(pl.cdiv(n_rows, 2), align))
    return t


# ---------------------------------------------------------------------------
# Kernel 1: node embedding linear layer   y = x @ W + b   (row-tiled)
# ---------------------------------------------------------------------------
def _linear_kernel(x_ref, w_ref, b_ref, o_ref):
    # MXU matmul in the weight's dtype (bf16 by default), f32 accumulation,
    # f32 bias add; storage cast to out dtype at the end.
    y = jnp.dot(x_ref[...].astype(w_ref.dtype), w_ref[...],
                preferred_element_type=jnp.float32) + b_ref[...]
    o_ref[...] = y.astype(o_ref.dtype)


def linear_embed(x, w, b, *, out_dtype=jnp.bfloat16, mxu_dtype=jnp.bfloat16,
                 max_row_tile=8192):
    """x: [N, F], w: [F, E], b: [1, E] -> [N, E]  (nt*_lin)."""
    N, F = x.shape
    E = w.shape[1]
    vmem_limit = _vmem_limit_bytes()
    TN = _pick_row_tile(N, F * x.dtype.itemsize,
                        budget_bytes=vmem_limit // 8,
                        max_tile=max_row_tile, align=8)
    G = pl.cdiv(N, TN)
    w_m = w.astype(mxu_dtype)                      # VMEM-resident weight copy
    out_itemsize = jnp.dtype(out_dtype).itemsize
    return pl.pallas_call(
        _linear_kernel,
        out_shape=jax.ShapeDtypeStruct((N, E), out_dtype),
        grid=(G,),
        in_specs=[
            pl.BlockSpec((TN, F), lambda i: (i, 0)),   # streamed node rows
            pl.BlockSpec((F, E), lambda i: (0, 0)),    # weight stays VMEM-resident
            pl.BlockSpec((1, E), lambda i: (0, 0)),    # bias stays VMEM-resident
        ],
        out_specs=pl.BlockSpec((TN, E), lambda i: (i, 0)),
        compiler_params=pltpu.CompilerParams(
            dimension_semantics=("parallel",),
            vmem_limit_bytes=vmem_limit,
        ),
        cost_estimate=pl.CostEstimate(
            flops=2 * N * F * E,
            transcendentals=0,
            bytes_accessed=(N * F * x.dtype.itemsize
                            + F * E * jnp.dtype(mxu_dtype).itemsize + E * 4
                            + N * E * out_itemsize),
        ),
    )(x, w_m, b)


# ---------------------------------------------------------------------------
# Kernel 2: fused edge feature ('dot') + 3-layer MLP head   (row-tiled)
# ---------------------------------------------------------------------------
def _edge_mlp_kernel(e1_ref, e2_ref, w1_ref, b1_ref, w2_ref, b2_ref,
                     w3t_ref, b3_ref, o_ref):
    mxu = w1_ref.dtype
    # 'dot' feature: elementwise product of endpoint embeddings, always f32 on
    # the VPU (v5e-safe); MXU operands then cast to `mxu` (bf16 by default).
    feat = e1_ref[...].astype(jnp.float32) * e2_ref[...].astype(jnp.float32)
    # Linear(E,32) + ReLU   (eval-mode Dropout = identity)
    h = jnp.dot(feat.astype(mxu), w1_ref[...],
                preferred_element_type=jnp.float32) + b1_ref[...]
    h = jnp.maximum(h, 0.0)
    # Linear(32,32) + ReLU  (eval-mode Dropout = identity)
    h = jnp.dot(h.astype(mxu), w2_ref[...],
                preferred_element_type=jnp.float32) + b2_ref[...]
    h = jnp.maximum(h, 0.0)
    # Final Linear(32,1) computed as (1,H) x (T,H)^T -> (1,T): a lane-dense row
    # per tile instead of a [T,1] column of 1-lane masked stores.  Any implied
    # rhs transpose runs on the XLU, which has slack in this HBM-bound kernel.
    logit = jax.lax.dot_general(
        w3t_ref[...], h.astype(mxu),
        dimension_numbers=(((1,), (1,)), ((), ())),
        preferred_element_type=jnp.float32,
    ) + b3_ref[...]
    o_ref[...] = logit[None]                       # (1, 1, T)


def edge_mlp(e1, e2, w1, b1, w2, b2, w3, b3, *, mxu_dtype=jnp.bfloat16,
             max_edge_tile=16384):
    """e1, e2: [Ne, E] gathered endpoint embeddings -> [Ne] logits."""
    Ne, E = e1.shape
    H1, H2 = w1.shape[1], w2.shape[1]
    vmem_limit = _vmem_limit_bytes()
    T = _pick_row_tile(Ne, E * e1.dtype.itemsize,
                       budget_bytes=vmem_limit // 8,
                       max_tile=max_edge_tile, align=128)
    G = pl.cdiv(Ne, T)
    w1_m = w1.astype(mxu_dtype)
    w2_m = w2.astype(mxu_dtype)
    w3t = w3.reshape(1, H2).astype(mxu_dtype)      # (H2, 1) -> (1, H2)
    e_itemsize = e1.dtype.itemsize
    w_itemsize = jnp.dtype(mxu_dtype).itemsize
    out = pl.pallas_call(
        _edge_mlp_kernel,
        out_shape=jax.ShapeDtypeStruct((G, 1, T), jnp.float32),
        grid=(G,),
        in_specs=[
            pl.BlockSpec((T, E), lambda i: (i, 0)),      # streamed edge rows
            pl.BlockSpec((T, E), lambda i: (i, 0)),
            pl.BlockSpec((E, H1), lambda i: (0, 0)),     # resident weights/biases
            pl.BlockSpec((1, H1), lambda i: (0, 0)),
            pl.BlockSpec((H1, H2), lambda i: (0, 0)),
            pl.BlockSpec((1, H2), lambda i: (0, 0)),
            pl.BlockSpec((1, H2), lambda i: (0, 0)),     # w3^T
            pl.BlockSpec((1, 1), lambda i: (0, 0)),      # b3
        ],
        out_specs=pl.BlockSpec((1, 1, T), lambda i: (i, 0, 0)),
        compiler_params=pltpu.CompilerParams(
            dimension_semantics=("parallel",),
            vmem_limit_bytes=vmem_limit,
        ),
        cost_estimate=pl.CostEstimate(
            flops=2 * Ne * (E * H1 + H1 * H2 + H2) + Ne * E,
            transcendentals=0,
            bytes_accessed=(2 * Ne * E * e_itemsize + G * T * 4
                            + (E * H1 + H1 * H2 + H2) * w_itemsize
                            + (H1 + H2 + 1) * 4),
        ),
    )(e1, e2, w1_m, b1, w2_m, b2, w3t, b3)
    # Tile-major order == edge order.  Rows of the partial last tile beyond Ne
    # hold garbage but stay row-independent through the MLP and are sliced off.
    return out.reshape(G * T)[:Ne]


# ---------------------------------------------------------------------------
# Full forward (glue: embeddings, gather by edge index, edge MLP)
# ---------------------------------------------------------------------------
def dlp_forward(params, x1, x2, edge_label_index, *,
                embed_dtype=jnp.bfloat16, mxu_dtype=jnp.bfloat16,
                max_row_tile=8192, max_edge_tile=16384):
    # node-type linear embeddings (row-tiled Pallas matmul kernels)
    h1 = linear_embed(x1, params["nt1_w"], params["nt1_b"],
                      out_dtype=embed_dtype, mxu_dtype=mxu_dtype,
                      max_row_tile=max_row_tile)
    h2 = linear_embed(x2, params["nt2_w"], params["nt2_b"],
                      out_dtype=embed_dtype, mxu_dtype=mxu_dtype,
                      max_row_tile=max_row_tile)
    # Per-edge endpoint gather (XLA).  NOTE: jnp.take clips out-of-range
    # indices (PyTorch would raise); intentional.  bf16 storage halves this
    # stream's HBM bytes.
    # TODO(synk): fuse this gather into the edge kernel once Mosaic exposes a
    #             fast global row gather (dynamic_gather only shuffles within
    #             (8,128) tiles; per-row DMA/slice gathers are slower than the
    #             HBM round-trip they would remove).
    e1 = jnp.take(h1, edge_label_index[0], axis=0)            # [Ne, E]
    e2 = jnp.take(h2, edge_label_index[1], axis=0)            # [Ne, E]
    # fused 'dot' feature + lin_layers MLP (row-tiled Pallas kernel) -> [Ne]
    return edge_mlp(
        e1, e2,
        params["l1_w"], params["l1_b"],
        params["l2_w"], params["l2_b"],
        params["l3_w"], params["l3_b"],
        mxu_dtype=mxu_dtype, max_edge_tile=max_edge_tile,
    )


def reference_forward(params, x1, x2, edge_label_index):
    h1 = x1 @ params["nt1_w"] + params["nt1_b"]
    h2 = x2 @ params["nt2_w"] + params["nt2_b"]
    feat = h1[edge_label_index[0]] * h2[edge_label_index[1]]
    h = jnp.maximum(feat @ params["l1_w"] + params["l1_b"], 0.0)
    h = jnp.maximum(h @ params["l2_w"] + params["l2_b"], 0.0)
    return jnp.squeeze(h @ params["l3_w"] + params["l3_b"], axis=-1)


# ---------------------------------------------------------------------------
# Demo / correctness checks
# ---------------------------------------------------------------------------
def _make_case(seed, N1, N2, F1, F2, E, H, Ne):
    keys = jax.random.split(jax.random.PRNGKey(seed), 14)
    params = {
        "nt1_w": 0.1 * jax.random.normal(keys[0], (F1, E), jnp.float32),
        "nt1_b": 0.1 * jax.random.normal(keys[1], (1, E), jnp.float32),
        "nt2_w": 0.1 * jax.random.normal(keys[2], (F2, E), jnp.float32),
        "nt2_b": 0.1 * jax.random.normal(keys[3], (1, E), jnp.float32),
        "l1_w": 0.1 * jax.random.normal(keys[4], (E, H), jnp.float32),
        "l1_b": 0.1 * jax.random.normal(keys[5], (1, H), jnp.float32),
        "l2_w": 0.1 * jax.random.normal(keys[6], (H, H), jnp.float32),
        "l2_b": 0.1 * jax.random.normal(keys[7], (1, H), jnp.float32),
        "l3_w": 0.1 * jax.random.normal(keys[8], (H, 1), jnp.float32),
        "l3_b": 0.1 * jax.random.normal(keys[9], (1, 1), jnp.float32),
    }
    x1 = jax.random.normal(keys[10], (N1, F1), jnp.float32)
    x2 = jax.random.normal(keys[11], (N2, F2), jnp.float32)
    edge_label_index = jnp.stack(
        [jax.random.randint(keys[12], (Ne,), 0, N1),
         jax.random.randint(keys[13], (Ne,), 0, N2)], axis=0)
    return params, x1, x2, edge_label_index


if __name__ == "__main__":
    fwd = jax.jit(dlp_forward,
                  static_argnames=("embed_dtype", "mxu_dtype",
                                   "max_row_tile", "max_edge_tile"))

    # Case 1: strict f32 path, small shapes (single tile per kernel), tight tol.
    params, x1, x2, eli = _make_case(0, N1=12, N2=10, F1=16, F2=24, E=32, H=32, Ne=8)
    ref = jax.block_until_ready(reference_forward(params, x1, x2, eli))
    out = jax.block_until_ready(
        fwd(params, x1, x2, eli, embed_dtype=jnp.float32, mxu_dtype=jnp.float32))
    assert out.shape == (8,), out.shape
    assert jnp.allclose(out, ref, atol=1e-5, rtol=1e-5), (out, ref)

    # Case 2: strict f32 path, forced multi-tile grids + partial last tiles.
    params2, x1b, x2b, eli2 = _make_case(0, N1=72, N2=50, F1=16, F2=24, E=32, H=32, Ne=300)
    ref2 = jax.block_until_ready(reference_forward(params2, x1b, x2b, eli2))
    out2 = jax.block_until_ready(
        fwd(params2, x1b, x2b, eli2, embed_dtype=jnp.float32, mxu_dtype=jnp.float32,
            max_row_tile=32, max_edge_tile=128))
    assert out2.shape == (300,), out2.shape
    assert jnp.allclose(out2, ref2, atol=1e-4, rtol=1e-4), \
        float(jnp.max(jnp.abs(out2 - ref2)))

    # Case 3: default path (bf16 storage + bf16 MXU operands, f32 accumulation).
    out3 = jax.block_until_ready(fwd(params, x1, x2, eli))
    assert out3.shape == (8,), out3.shape
    assert jnp.allclose(out3, ref, atol=5e-2, rtol=5e-2), (out3, ref)

    # Case 4: default path, Ne large enough to trigger the >=2-grid-step split
    # (megacore sharding) and a partial last edge tile.
    out4 = jax.block_until_ready(fwd(params2, x1b, x2b, eli2))
    assert out4.shape == (300,), out4.shape
    assert jnp.allclose(out4, ref2, atol=5e-2, rtol=5e-2), \
        float(jnp.max(jnp.abs(out4 - ref2)))

    print("KERNEL_OK")
</pallas_src>

<mosaic_0001>
module attributes {stable_mosaic.version = 11 : i64} {
  func.func @_linear_kernel(%arg0: i32, %arg1: memref<16x24xf32, #tpu.memory_space<vmem>>, %arg2: memref<24x32xf32, #tpu.memory_space<vmem>>, %arg3: memref<1x32xf32, #tpu.memory_space<vmem>>, %arg4: memref<16x32xf32, #tpu.memory_space<vmem>>) attributes {dimension_semantics = [#tpu.dimension_semantics<parallel>], iteration_bounds = array<i64: 1>, scalar_prefetch = 0 : i64, scratch_operands = 0 : i64, tpu.core_type = #tpu.core_type<tc>, window_params = [{transform_indices = @transform_0, window_bounds = array<i64: 16, 24>}, {pipeline_mode = #tpu.pipeline_mode<synchronous>, transform_indices = @transform_1, window_bounds = array<i64: 24, 32>}, {pipeline_mode = #tpu.pipeline_mode<synchronous>, transform_indices = @transform_2, window_bounds = array<i64: 1, 32>}, {transform_indices = @transform_3, window_bounds = array<i64: 16, 32>}]} {
    %c0 = arith.constant 0 : index
    %c0_0 = arith.constant 0 : index
    %0 = vector.load %arg1[%c0, %c0_0] : memref<16x24xf32, #tpu.memory_space<vmem>>, vector<16x24xf32>
    %c0_1 = arith.constant 0 : index
    %c0_2 = arith.constant 0 : index
    %1 = vector.load %arg2[%c0_1, %c0_2] : memref<24x32xf32, #tpu.memory_space<vmem>>, vector<24x32xf32>
    %cst = arith.constant dense<0.000000e+00> : vector<16x32xf32>
    %2 = tpu.matmul %0, %1, %cst {dimension_numbers = #tpu.dot_dimension_numbers<[1], [0], [0], [1], [0, 0, 1, 1], [], []>} : vector<16x24xf32>, vector<24x32xf32>, vector<16x32xf32> -> vector<16x32xf32>
    %c0_3 = arith.constant 0 : index
    %c0_4 = arith.constant 0 : index
    %3 = vector.load %arg3[%c0_3, %c0_4] : memref<1x32xf32, #tpu.memory_space<vmem>>, vector<1x32xf32>
    %4 = vector.broadcast %3 : vector<1x32xf32> to vector<16x32xf32>
    %5 = arith.addf %2, %4 : vector<16x32xf32>
    %c0_5 = arith.constant 0 : index
    %c0_6 = arith.constant 0 : index
    %6 = vector.load %arg4[%c0_5, %c0_6] : memref<16x32xf32, #tpu.memory_space<vmem>>, vector<16x32xf32>
    tpu.vector_store %arg4[%c0_5, %c0_6], %5 {strides = array<i32>} : memref<16x32xf32, #tpu.memory_space<vmem>>, vector<16x32xf32>,
    return
  }
  func.func @transform_0(%arg0: i32) -> (i32, i32) {
    %c0_i32 = arith.constant 0 : i32
    %c0_i32_0 = arith.constant 0 : i32
    return %arg0, %c0_i32 : i32, i32
  }
  func.func @transform_1(%arg0: i32) -> (i32, i32) {
    %c0_i32 = arith.constant 0 : i32
    %c0_i32_0 = arith.constant 0 : i32
    %c0_i32_1 = arith.constant 0 : i32
    return %c0_i32, %c0_i32_0 : i32, i32
  }
  func.func @transform_2(%arg0: i32) -> (i32, i32) {
    %c0_i32 = arith.constant 0 : i32
    %c0_i32_0 = arith.constant 0 : i32
    %c0_i32_1 = arith.constant 0 : i32
    return %c0_i32, %c0_i32_0 : i32, i32
  }
  func.func @transform_3(%arg0: i32) -> (i32, i32) {
    %c0_i32 = arith.constant 0 : i32
    %c0_i32_0 = arith.constant 0 : i32
    return %arg0, %c0_i32 : i32, i32
  }
}

module attributes {stable_mosaic.version = 11 : i64} {
  func.func @_edge_mlp_kernel(%arg0: i32, %arg1: memref<128x32xf32, #tpu.memory_space<vmem>>, %arg2: memref<128x32xf32, #tpu.memory_space<vmem>>, %arg3: memref<32x32xf32, #tpu.memory_space<vmem>>, %arg4: memref<1x32xf32, #tpu.memory_space<vmem>>, %arg5: memref<32x32xf32, #tpu.memory_space<vmem>>, %arg6: memref<1x32xf32, #tpu.memory_space<vmem>>, %arg7: memref<1x32xf32, #tpu.memory_space<vmem>>, %arg8: memref<1x1xf32, #tpu.memory_space<vmem>>, %arg9: memref<1x1x128xf32, #tpu.memory_space<vmem>>) attributes {dimension_semantics = [#tpu.dimension_semantics<parallel>], iteration_bounds = array<i64: 1>, scalar_prefetch = 0 : i64, scratch_operands = 0 : i64, tpu.core_type = #tpu.core_type<tc>, window_params = [{transform_indices = @transform_0, window_bounds = array<i64: 128, 32>}, {transform_indices = @transform_1, window_bounds = array<i64: 128, 32>}, {pipeline_mode = #tpu.pipeline_mode<synchronous>, transform_indices = @transform_2, window_bounds = array<i64: 32, 32>}, {pipeline_mode = #tpu.pipeline_mode<synchronous>, transform_indices = @transform_3, window_bounds = array<i64: 1, 32>}, {pipeline_mode = #tpu.pipeline_mode<synchronous>, transform_indices = @transform_4, window_bounds = array<i64: 32, 32>}, {pipeline_mode = #tpu.pipeline_mode<synchronous>, transform_indices = @transform_5, window_bounds = array<i64: 1, 32>}, {pipeline_mode = #tpu.pipeline_mode<synchronous>, transform_indices = @transform_6, window_bounds = array<i64: 1, 32>}, {pipeline_mode = #tpu.pipeline_mode<synchronous>, transform_indices = @transform_7, window_bounds = array<i64: 1, 1>}, {transform_indices = @transform_8, window_bounds = array<i64: 1, 1, 128>}]} {
    %c0 = arith.constant 0 : index
    %c0_0 = arith.constant 0 : index
    %0 = vector.load %arg1[%c0, %c0_0] : memref<128x32xf32, #tpu.memory_space<vmem>>, vector<128x32xf32>
    %c0_1 = arith.constant 0 : index
    %c0_2 = arith.constant 0 : index
    %1 = vector.load %arg2[%c0_1, %c0_2] : memref<128x32xf32, #tpu.memory_space<vmem>>, vector<128x32xf32>
    %2 = arith.mulf %0, %1 : vector<128x32xf32>
    %c0_3 = arith.constant 0 : index
    %c0_4 = arith.constant 0 : index
    %3 = vector.load %arg3[%c0_3, %c0_4] : memref<32x32xf32, #tpu.memory_space<vmem>>, vector<32x32xf32>
    %cst = arith.constant dense<0.000000e+00> : vector<128x32xf32>
    %4 = tpu.matmul %2, %3, %cst {dimension_numbers = #tpu.dot_dimension_numbers<[1], [0], [0], [1], [0, 0, 1, 1], [], []>} : vector<128x32xf32>, vector<32x32xf32>, vector<128x32xf32> -> vector<128x32xf32>
    %c0_5 = arith.constant 0 : index
    %c0_6 = arith.constant 0 : index
    %5 = vector.load %arg4[%c0_5, %c0_6] : memref<1x32xf32, #tpu.memory_space<vmem>>, vector<1x32xf32>
    %6 = vector.broadcast %5 : vector<1x32xf32> to vector<128x32xf32>
    %7 = arith.addf %4, %6 : vector<128x32xf32>
    %cst_7 = arith.constant 0.000000e+00 : f32
    %8 = vector.broadcast %cst_7 : f32 to vector<128x32xf32>
    %9 = arith.maximumf %7, %8 : vector<128x32xf32>
    %c0_8 = arith.constant 0 : index
    %c0_9 = arith.constant 0 : index
    %10 = vector.load %arg5[%c0_8, %c0_9] : memref<32x32xf32, #tpu.memory_space<vmem>>, vector<32x32xf32>
    %cst_10 = arith.constant dense<0.000000e+00> : vector<128x32xf32>
    %11 = tpu.matmul %9, %10, %cst_10 {dimension_numbers = #tpu.dot_dimension_numbers<[1], [0], [0], [1], [0, 0, 1, 1], [], []>} : vector<128x32xf32>, vector<32x32xf32>, vector<128x32xf32> -> vector<128x32xf32>
    %c0_11 = arith.constant 0 : index
    %c0_12 = arith.constant 0 : index
    %12 = vector.load %arg6[%c0_11, %c0_12] : memref<1x32xf32, #tpu.memory_space<vmem>>, vector<1x32xf32>
    %13 = vector.broadcast %12 : vector<1x32xf32> to vector<128x32xf32>
    %14 = arith.addf %11, %13 : vector<128x32xf32>
    %cst_13 = arith.constant 0.000000e+00 : f32
    %15 = vector.broadcast %cst_13 : f32 to vector<128x32xf32>
    %16 = arith.maximumf %14, %15 : vector<128x32xf32>
    %c0_14 = arith.constant 0 : index
    %c0_15 = arith.constant 0 : index
    %17 = vector.load %arg7[%c0_14, %c0_15] : memref<1x32xf32, #tpu.memory_space<vmem>>, vector<1x32xf32>
    %cst_16 = arith.constant dense<0.000000e+00> : vector<1x128xf32>
    %18 = tpu.matmul %17, %16, %cst_16 {dimension_numbers = #tpu.dot_dimension_numbers<[1], [1], [0], [0], [0, 0, 1, 0], [], []>} : vector<1x32xf32>, vector<128x32xf32>, vector<1x128xf32> -> vector<1x128xf32>
    %c0_17 = arith.constant 0 : index
    %c0_18 = arith.constant 0 : index
    %19 = vector.load %arg8[%c0_17, %c0_18] : memref<1x1xf32, #tpu.memory_space<vmem>>, vector<1x1xf32>
    %20 = vector.broadcast %19 : vector<1x1xf32> to vector<1x128xf32>
    %21 = arith.addf %18, %20 : vector<1x128xf32>
    %22 = vector.shape_cast %21 : vector<1x128xf32> to vector<1x1x128xf32>
    %c0_19 = arith.constant 0 : index
    %c0_20 = arith.constant 0 : index
    %c0_21 = arith.constant 0 : index
    %23 = vector.load %arg9[%c0_19, %c0_20, %c0_21] : memref<1x1x128xf32, #tpu.memory_space<vmem>>, vector<1x1x128xf32>
    tpu.vector_store %arg9[%c0_19, %c0_20, %c0_21], %22 {strides = array<i32>} : memref<1x1x128xf32, #tpu.memory_space<vmem>>, vector<1x1x128xf32>,
    return
  }
  func.func @transform_0(%arg0: i32) -> (i32, i32) {
    %c0_i32 = arith.constant 0 : i32
    %c0_i32_0 = arith.constant 0 : i32
    return %arg0, %c0_i32 : i32, i32
  }
  func.func @transform_1(%arg0: i32) -> (i32, i32) {
    %c0_i32 = arith.constant 0 : i32
    %c0_i32_0 = arith.constant 0 : i32
    return %arg0, %c0_i32 : i32, i32
  }
  func.func @transform_2(%arg0: i32) -> (i32, i32) {
    %c0_i32 = arith.constant 0 : i32
    %c0_i32_0 = arith.constant 0 : i32
    %c0_i32_1 = arith.constant 0 : i32
    return %c0_i32, %c0_i32_0 : i32, i32
  }
  func.func @transform_3(%arg0: i32) -> (i32, i32) {
    %c0_i32 = arith.constant 0 : i32
    %c0_i32_0 = arith.constant 0 : i32
    %c0_i32_1 = arith.constant 0 : i32
    return %c0_i32, %c0_i32_0 : i32, i32
  }
  func.func @transform_4(%arg0: i32) -> (i32, i32) {
    %c0_i32 = arith.constant 0 : i32
    %c0_i32_0 = arith.constant 0 : i32
    %c0_i32_1 = arith.constant 0 : i32
    return %c0_i32, %c0_i32_0 : i32, i32
  }
  func.func @transform_5(%arg0: i32) -> (i32, i32) {
    %c0_i32 = arith.constant 0 : i32
    %c0_i32_0 = arith.constant 0 : i32
    %c0_i32_1 = arith.constant 0 : i32
    return %c0_i32, %c0_i32_0 : i32, i32
  }
  func.func @transform_6(%arg0: i32) -> (i32, i32) {
    %c0_i32 = arith.constant 0 : i32
    %c0_i32_0 = arith.constant 0 : i32
    %c0_i32_1 = arith.constant 0 : i32
    return %c0_i32, %c0_i32_0 : i32, i32
  }
  func.func @transform_7(%arg0: i32) -> (i32, i32) {
    %c0_i32 = arith.constant 0 : i32
    %c0_i32_0 = arith.constant 0 : i32
    %c0_i32_1 = arith.constant 0 : i32
    return %c0_i32, %c0_i32_0 : i32, i32
  }
  func.func @transform_8(%arg0: i32) -> (i32, i32, i32) {
    %c0_i32 = arith.constant 0 : i32
    %c0_i32_0 = arith.constant 0 : i32
    %c0_i32_1 = arith.constant 0 : i32
    return %arg0, %c0_i32, %c0_i32_0 : i32, i32, i32
  }
}

module attributes {stable_mosaic.version = 11 : i64} {
  func.func @_linear_kernel(%arg0: i32, %arg1: memref<16x16xf32, #tpu.memory_space<vmem>>, %arg2: memref<16x32xf32, #tpu.memory_space<vmem>>, %arg3: memref<1x32xf32, #tpu.memory_space<vmem>>, %arg4: memref<16x32xf32, #tpu.memory_space<vmem>>) attributes {dimension_semantics = [#tpu.dimension_semantics<parallel>], iteration_bounds = array<i64: 1>, scalar_prefetch = 0 : i64, scratch_operands = 0 : i64, tpu.core_type = #tpu.core_type<tc>, window_params = [{transform_indices = @transform_0, window_bounds = array<i64: 16, 16>}, {pipeline_mode = #tpu.pipeline_mode<synchronous>, transform_indices = @transform_1, window_bounds = array<i64: 16, 32>}, {pipeline_mode = #tpu.pipeline_mode<synchronous>, transform_indices = @transform_2, window_bounds = array<i64: 1, 32>}, {transform_indices = @transform_3, window_bounds = array<i64: 16, 32>}]} {
    %c0 = arith.constant 0 : index
    %c0_0 = arith.constant 0 : index
    %0 = vector.load %arg1[%c0, %c0_0] : memref<16x16xf32, #tpu.memory_space<vmem>>, vector<16x16xf32>
    %c0_1 = arith.constant 0 : index
    %c0_2 = arith.constant 0 : index
    %1 = vector.load %arg2[%c0_1, %c0_2] : memref<16x32xf32, #tpu.memory_space<vmem>>, vector<16x32xf32>
    %cst = arith.constant dense<0.000000e+00> : vector<16x32xf32>
    %2 = tpu.matmul %0, %1, %cst {dimension_numbers = #tpu.dot_dimension_numbers<[1], [0], [0], [1], [0, 0, 1, 1], [], []>} : vector<16x16xf32>, vector<16x32xf32>, vector<16x32xf32> -> vector<16x32xf32>
    %c0_3 = arith.constant 0 : index
    %c0_4 = arith.constant 0 : index
    %3 = vector.load %arg3[%c0_3, %c0_4] : memref<1x32xf32, #tpu.memory_space<vmem>>, vector<1x32xf32>
    %4 = vector.broadcast %3 : vector<1x32xf32> to vector<16x32xf32>
    %5 = arith.addf %2, %4 : vector<16x32xf32>
    %c0_5 = arith.constant 0 : index
    %c0_6 = arith.constant 0 : index
    %6 = vector.load %arg4[%c0_5, %c0_6] : memref<16x32xf32, #tpu.memory_space<vmem>>, vector<16x32xf32>
    tpu.vector_store %arg4[%c0_5, %c0_6], %5 {strides = array<i32>} : memref<16x32xf32, #tpu.memory_space<vmem>>, vector<16x32xf32>,
    return
  }
  func.func @transform_0(%arg0: i32) -> (i32, i32) {
    %c0_i32 = arith.constant 0 : i32
    %c0_i32_0 = arith.constant 0 : i32
    return %arg0, %c0_i32 : i32, i32
  }
  func.func @transform_1(%arg0: i32) -> (i32, i32) {
    %c0_i32 = arith.constant 0 : i32
    %c0_i32_0 = arith.constant 0 : i32
    %c0_i32_1 = arith.constant 0 : i32
    return %c0_i32, %c0_i32_0 : i32, i32
  }
  func.func @transform_2(%arg0: i32) -> (i32, i32) {
    %c0_i32 = arith.constant 0 : i32
    %c0_i32_0 = arith.constant 0 : i32
    %c0_i32_1 = arith.constant 0 : i32
    return %c0_i32, %c0_i32_0 : i32, i32
  }
  func.func @transform_3(%arg0: i32) -> (i32, i32) {
    %c0_i32 = arith.constant 0 : i32
    %c0_i32_0 = arith.constant 0 : i32
    return %arg0, %c0_i32 : i32, i32
  }
}

</mosaic_0001>

<llo_original>
// kernel: dlp_forward.4
$region0: #{dlp_forward.4}
  #allocation0 [shape = 'u32[]', space=smem, size = 0x4, offset = 0x4, fixed_abs, tag = 'smem constant byte address 0x4 - core index']
  #allocation1 [shape = 'u32[144,128]{1,0:T(1,128)}', space=vmem, size = 0x12000, scoped, tag = 'internal scratch']
  %s0 = inlined_call_operand.vmem [shape: f32[10,24], index: 0, kind: input, shape index: {}]
  %s1 = inlined_call_operand.vmem [shape: f32[24,32], index: 1, kind: input, shape index: {}]
  %s2 = inlined_call_operand.vmem [shape: f32[1,32], index: 2, kind: input, shape index: {}]
  %s3 = inlined_call_operand.vmem [shape: f32[10,32], index: 3, kind: output, shape index: {}]
  %s4 = sld [smem:[#allocation0]]
  $region22: #{dlp_forward.4} parent=0
    _
  %s6 = ssub.s32 1, %s4
  %s7 = scalar_select 0, %s6, %s4
  // Predicated region
  $region2: #{dlp_forward.4} parent=0 // pred_check
    _
  $region3: #{dlp_forward.4} parent=0 // pred_check_branch
    %9 = sbr.rel (0) target = $region5
  $region4: #{dlp_forward.4} parent=0 // pred_region
    _
  $region5: #{dlp_forward.4} parent=0 // pred_fallthru
    _
  // Predicated region
  $region6: #{dlp_forward.4} parent=0 // pred_check
    _
  $region7: #{dlp_forward.4} parent=0 // pred_check_branch
    %11 = sbr.rel (0) target = $region9
  $region8: #{dlp_forward.4} parent=0 // pred_region
    _
  $region9: #{dlp_forward.4} parent=0 // pred_fallthru
    _
  // Predicated region
  $region10: #{dlp_forward.4} parent=0 // pred_check
    _
  $region11: #{dlp_forward.4} parent=0 // pred_check_branch
    %13 = sbr.rel (0) target = $region13
  $region12: #{dlp_forward.4} parent=0 // pred_region
    _
  $region13: #{dlp_forward.4} parent=0 // pred_fallthru
    _
  %v14 = vld [vmem:[%s0] sm:$0xff]
  %v15 = vld [vmem:[%s0 + $0x8] sm:$0xff]
  %v16 = vld [vmem:[%s1] sm:$0xff]
  %v17 = vld [vmem:[%s1 + $0x8] sm:$0xff]
  %v18 = vld [vmem:[%s1 + $0x10] sm:$0xff]
  %v19 = vld [vmem:[%s2] sm:$0x1]
  %v21 = vlaneseq
  %v22 = vshrl.u32 %v21, 7
  %v23 = vsub.s32 0, %v22
  %v24 = vrot.slane %v19, %v23
  %vm26 = vcmask 195584
  %v28 = vsel %vm26, %v14, 0
  %v31 = vsel %vm26, %v15, 0
  %33 = vmatprep.subr.mxu0 0.0
  %34 = vmatpush1.msra.mxu0 0.0
  %35 = vmatprep.subr.mxu0 0.0
  %36 = vmatpush1.msra.mxu0 0.0
  %37 = vmatprep.subr.mxu0 0.0
  %38 = vmatpush1.msra.mxu0 0.0
  %39 = vmatprep.subr.mxu0 0.0
  %40 = vmatpush1.msra.mxu0 0.0
  %41 = vmatprep.subr.mxu0 0.0
  %42 = vmatpush1.msra.mxu0 0.0
  %43 = vmatprep.subr.mxu0 0.0
  %44 = vmatpush1.msra.mxu0 0.0
  %45 = vmatprep.subr.mxu0 0.0
  %46 = vmatpush1.msra.mxu0 0.0
  %47 = vmatprep.subr.mxu0 0.0
  %48 = vmatpush1.msra.mxu0 0.0
  %49 = vmatprep.subr.mxu0 0.0
  %50 = vmatpush1.msra.mxu0 0.0
  %51 = vmatprep.subr.mxu0 0.0
  %52 = vmatpush1.msra.mxu0 0.0
  %53 = vmatprep.subr.mxu0 0.0
  %54 = vmatpush1.msra.mxu0 0.0
  %55 = vmatprep.subr.mxu0 0.0
  %56 = vmatpush1.msra.mxu0 0.0
  %57 = vmatprep.subr.mxu0 0.0
  %58 = vmatpush1.msra.mxu0 0.0
  %59 = vmatprep.subr.mxu0 0.0
  %60 = vmatpush1.msra.mxu0 %v18
  %61 = vmatprep.subr.mxu0 0.0
  %62 = vmatpush1.msra.mxu0 %v17
  %63 = vmatprep.subr.mxu0 0.0
  %64 = vmatpush1.msra.mxu0 %v16
  %65 = vmatprep.subr.mxu0 0.0
  %66 = vmatpush2.msra.mxu0 0.0
  %67 = vmatprep.subr.mxu0 0.0
  %68 = vmatpush2.msra.mxu0 0.0
  %69 = vmatprep.subr.mxu0 0.0
  %70 = vmatpush2.msra.mxu0 0.0
  %71 = vmatprep.subr.mxu0 0.0
  %72 = vmatpush2.msra.mxu0 0.0
  %73 = vmatprep.subr.mxu0 0.0
  %74 = vmatpush2.msra.mxu0 0.0
  %75 = vmatprep.subr.mxu0 0.0
  %76 = vmatpush2.msra.mxu0 0.0
  %77 = vmatprep.subr.mxu0 0.0
  %78 = vmatpush2.msra.mxu0 0.0
  %79 = vmatprep.subr.mxu0 0.0
  %80 = vmatpush2.msra.mxu0 0.0
  %81 = vmatprep.subr.mxu0 0.0
  %82 = vmatpush2.msra.mxu0 0.0
  %83 = vmatprep.subr.mxu0 0.0
  %84 = vmatpush2.msra.mxu0 0.0
  %85 = vmatprep.subr.mxu0 0.0
  %86 = vmatpush2.msra.mxu0 0.0
  %87 = vmatprep.subr.mxu0 0.0
  %88 = vmatpush2.msra.mxu0 0.0
  %89 = vmatprep.subr.mxu0 0.0
  %90 = vmatpush2.msra.mxu0 0.0
  %91 = vmatprep.subr.mxu0 0.0
  %92 = vmatpush2.msra.mxu0 0.0
  %93 = vmatprep.subr.mxu0 0.0
  %94 = vmatpush2.msra.mxu0 0.0
  %95 = vmatprep.subr.mxu0 0.0
  %96 = vmatpush2.msra.mxu0 0.0
  %97 = vmatprep.mubr.f32.mxu0 0.0
  %98 = vmatmul.mubr.f32.gmra.mxu0 %v28
  %v99 = vpop.f32.mrf.mxu0
  %v100 = vadd.f32 %v24, %v99
  %v101 = vpop.f32.mrf.mxu0
  %102 = vmatprep.mubr.f32.mxu0 0.0
  %103 = vmatmul.mubr.f32.gmra.mxu0 %v31
  %v104 = vpop.f32.mrf.mxu0
  %v105 = vadd.f32 %v24, %v104
  %v106 = vpop.f32.mrf.mxu0
  %107 = vdwg.mxu0
  %vm108 = vcmask 261120
  %109 = vst.msk [vmem:[%s3] sm:$0xff] %vm108, %v100
  %110 = vst.msk [vmem:[%s3 + $0x8] sm:$0xff] %vm108, %v105
  // Predicated region
  $region14: #{dlp_forward.4} parent=0 // pred_check
    _
  $region15: #{dlp_forward.4} parent=0 // pred_check_branch
    %112 = sbr.rel (0) target = $region17
  $region16: #{dlp_forward.4} parent=0 // pred_region
    _
  $region17: #{dlp_forward.4} parent=0 // pred_fallthru
    _
  // Predicated region
  $region18: #{dlp_forward.4} parent=0 // pred_check
    _
  $region19: #{dlp_forward.4} parent=0 // pred_check_branch
    %114 = sbr.rel (0) target = $region21
  $region20: #{dlp_forward.4} parent=0 // pred_region
    _
  $region21: #{dlp_forward.4} parent=0 // pred_fallthru
    _

// kernel: dlp_forward.3
$region0: #{dlp_forward.3}
  #allocation0 [shape = 'u32[]', space=smem, size = 0x4, offset = 0x4, fixed_abs, tag = 'smem constant byte address 0x4 - core index']
  #allocation1 [shape = 'u32[144,128]{1,0:T(1,128)}', space=vmem, size = 0x12000, scoped, tag = 'internal scratch']
  %s0 = inlined_call_operand.vmem [shape: f32[12,16], index: 0, kind: input, shape index: {}]
  %s1 = inlined_call_operand.vmem [shape: f32[16,32], index: 1, kind: input, shape index: {}]
  %s2 = inlined_call_operand.vmem [shape: f32[1,32], index: 2, kind: input, shape index: {}]
  %s3 = inlined_call_operand.vmem [shape: f32[12,32], index: 3, kind: output, shape index: {}]
  %s4 = sld [smem:[#allocation0]]
  $region22: #{dlp_forward.3} parent=0
    _
  %s6 = ssub.s32 1, %s4
  %s7 = scalar_select 0, %s6, %s4
  // Predicated region
  $region2: #{dlp_forward.3} parent=0 // pred_check
    _
  $region3: #{dlp_forward.3} parent=0 // pred_check_branch
    %9 = sbr.rel (0) target = $region5
  $region4: #{dlp_forward.3} parent=0 // pred_region
    _
  $region5: #{dlp_forward.3} parent=0 // pred_fallthru
    _
  // Predicated region
  $region6: #{dlp_forward.3} parent=0 // pred_check
    _
  $region7: #{dlp_forward.3} parent=0 // pred_check_branch
    %11 = sbr.rel (0) target = $region9
  $region8: #{dlp_forward.3} parent=0 // pred_region
    _
  $region9: #{dlp_forward.3} parent=0 // pred_fallthru
    _
  // Predicated region
  $region10: #{dlp_forward.3} parent=0 // pred_check
    _
  $region11: #{dlp_forward.3} parent=0 // pred_check_branch
    %13 = sbr.rel (0) target = $region13
  $region12: #{dlp_forward.3} parent=0 // pred_region
    _
  $region13: #{dlp_forward.3} parent=0 // pred_fallthru
    _
  %v14 = vld [vmem:[%s0] sm:$0xff]
  %v15 = vld [vmem:[%s0 + $0x8] sm:$0xff]
  %v16 = vld [vmem:[%s1] sm:$0xff]
  %v17 = vld [vmem:[%s1 + $0x8] sm:$0xff]
  %v18 = vld [vmem:[%s2] sm:$0x1]
  %v20 = vlaneseq
  %v21 = vshrl.u32 %v20, 7
  %v22 = vsub.s32 0, %v21
  %v23 = vrot.slane %v18, %v22
  %vm25 = vcmask 130048
  %v27 = vsel %vm25, %v14, 0
  %v30 = vsel %vm25, %v15, 0
  %32 = vmatprep.subr.mxu0 0.0
  %33 = vmatpush1.msra.mxu0 0.0
  %34 = vmatprep.subr.mxu0 0.0
  %35 = vmatpush1.msra.mxu0 0.0
  %36 = vmatprep.subr.mxu0 0.0
  %37 = vmatpush1.msra.mxu0 0.0
  %38 = vmatprep.subr.mxu0 0.0
  %39 = vmatpush1.msra.mxu0 0.0
  %40 = vmatprep.subr.mxu0 0.0
  %41 = vmatpush1.msra.mxu0 0.0
  %42 = vmatprep.subr.mxu0 0.0
  %43 = vmatpush1.msra.mxu0 0.0
  %44 = vmatprep.subr.mxu0 0.0
  %45 = vmatpush1.msra.mxu0 0.0
  %46 = vmatprep.subr.mxu0 0.0
  %47 = vmatpush1.msra.mxu0 0.0
  %48 = vmatprep.subr.mxu0 0.0
  %49 = vmatpush1.msra.mxu0 0.0
  %50 = vmatprep.subr.mxu0 0.0
  %51 = vmatpush1.msra.mxu0 0.0
  %52 = vmatprep.subr.mxu0 0.0
  %53 = vmatpush1.msra.mxu0 0.0
  %54 = vmatprep.subr.mxu0 0.0
  %55 = vmatpush1.msra.mxu0 0.0
  %56 = vmatprep.subr.mxu0 0.0
  %57 = vmatpush1.msra.mxu0 0.0
  %58 = vmatprep.subr.mxu0 0.0
  %59 = vmatpush1.msra.mxu0 0.0
  %60 = vmatprep.subr.mxu0 0.0
  %61 = vmatpush1.msra.mxu0 %v17
  %62 = vmatprep.subr.mxu0 0.0
  %63 = vmatpush1.msra.mxu0 %v16
  %64 = vmatprep.subr.mxu0 0.0
  %65 = vmatpush2.msra.mxu0 0.0
  %66 = vmatprep.subr.mxu0 0.0
  %67 = vmatpush2.msra.mxu0 0.0
  %68 = vmatprep.subr.mxu0 0.0
  %69 = vmatpush2.msra.mxu0 0.0
  %70 = vmatprep.subr.mxu0 0.0
  %71 = vmatpush2.msra.mxu0 0.0
  %72 = vmatprep.subr.mxu0 0.0
  %73 = vmatpush2.msra.mxu0 0.0
  %74 = vmatprep.subr.mxu0 0.0
  %75 = vmatpush2.msra.mxu0 0.0
  %76 = vmatprep.subr.mxu0 0.0
  %77 = vmatpush2.msra.mxu0 0.0
  %78 = vmatprep.subr.mxu0 0.0
  %79 = vmatpush2.msra.mxu0 0.0
  %80 = vmatprep.subr.mxu0 0.0
  %81 = vmatpush2.msra.mxu0 0.0
  %82 = vmatprep.subr.mxu0 0.0
  %83 = vmatpush2.msra.mxu0 0.0
  %84 = vmatprep.subr.mxu0 0.0
  %85 = vmatpush2.msra.mxu0 0.0
  %86 = vmatprep.subr.mxu0 0.0
  %87 = vmatpush2.msra.mxu0 0.0
  %88 = vmatprep.subr.mxu0 0.0
  %89 = vmatpush2.msra.mxu0 0.0
  %90 = vmatprep.subr.mxu0 0.0
  %91 = vmatpush2.msra.mxu0 0.0
  %92 = vmatprep.subr.mxu0 0.0
  %93 = vmatpush2.msra.mxu0 0.0
  %94 = vmatprep.subr.mxu0 0.0
  %95 = vmatpush2.msra.mxu0 0.0
  %96 = vmatprep.mubr.f32.mxu0 0.0
  %97 = vmatmul.mubr.f32.gmra.mxu0 %v27
  %v98 = vpop.f32.mrf.mxu0
  %v99 = vadd.f32 %v23, %v98
  %v100 = vpop.f32.mrf.mxu0
  %101 = vmatprep.mubr.f32.mxu0 0.0
  %102 = vmatmul.mubr.f32.gmra.mxu0 %v30
  %v103 = vpop.f32.mrf.mxu0
  %v104 = vadd.f32 %v23, %v103
  %v105 = vpop.f32.mrf.mxu0
  %106 = vdwg.mxu0
  %vm107 = vcmask 261120
  %108 = vst.msk [vmem:[%s3] sm:$0xff] %vm107, %v99
  %109 = vst.msk [vmem:[%s3 + $0x8] sm:$0xff] %vm107, %v104
  // Predicated region
  $region14: #{dlp_forward.3} parent=0 // pred_check
    _
  $region15: #{dlp_forward.3} parent=0 // pred_check_branch
    %111 = sbr.rel (0) target = $region17
  $region16: #{dlp_forward.3} parent=0 // pred_region
    _
  $region17: #{dlp_forward.3} parent=0 // pred_fallthru
    _
  // Predicated region
  $region18: #{dlp_forward.3} parent=0 // pred_check
    _
  $region19: #{dlp_forward.3} parent=0 // pred_check_branch
    %113 = sbr.rel (0) target = $region21
  $region20: #{dlp_forward.3} parent=0 // pred_region
    _
  $region21: #{dlp_forward.3} parent=0 // pred_fallthru
    _

// kernel: dlp_forward.5
$region0: #{dlp_forward.5}
  #allocation0 [shape = 'u32[]', space=smem, size = 0x4, offset = 0x4, fixed_abs, tag = 'smem constant byte address 0x4 - core index']
  #allocation1 [shape = 'u32[144,128]{1,0:T(1,128)}', space=vmem, size = 0x12000, scoped, tag = 'internal scratch']
  #allocation2 [shape = 'f32[1,1]{1,0:T(1,128)S(1)}', space=vmem, size = 0x200, scoped, tag = 'scoped memory for dlp_forward.5']
  %s0 = inlined_call_operand.vmem [shape: f32[8,32], index: 0, kind: input, shape index: {}]
  %s1 = inlined_call_operand.vmem [shape: f32[8,32], index: 1, kind: input, shape index: {}]
  %s2 = inlined_call_operand.vmem [shape: f32[32,32], index: 2, kind: input, shape index: {}]
  %s3 = inlined_call_operand.vmem [shape: f32[1,32], index: 3, kind: input, shape index: {}]
  %s4 = inlined_call_operand.vmem [shape: f32[32,32], index: 4, kind: input, shape index: {}]
  %s5 = inlined_call_operand.vmem [shape: f32[1,32], index: 5, kind: input, shape index: {}]
  %s6 = inlined_call_operand.vmem [shape: f32[1,32], index: 6, kind: input, shape index: {}]
  %s7 = inlined_call_operand.<no memory space> [shape: f32[1,1], index: 7, kind: input, shape index: {}]
  %s8 = inlined_call_operand.vmem [shape: f32[1,1,128], index: 8, kind: output, shape index: {}]
  %s9 = sld [smem:[#allocation0]]
  $region42: #{dlp_forward.5} parent=0
    _
  %s11 = ssub.s32 1, %s9
  %s12 = scalar_select 0, %s11, %s9
  %v13 = vstv %s7
  %14 = vst [vmem:[#allocation2] sm:$0x1] %v13
  // Predicated region
  $region2: #{dlp_forward.5} parent=0 // pred_check
    _
  $region3: #{dlp_forward.5} parent=0 // pred_check_branch
    %16 = sbr.rel (0) target = $region5
  $region4: #{dlp_forward.5} parent=0 // pred_region
    _
  $region5: #{dlp_forward.5} parent=0 // pred_fallthru
    _
  // Predicated region
  $region6: #{dlp_forward.5} parent=0 // pred_check
    _
  $region7: #{dlp_forward.5} parent=0 // pred_check_branch
    %18 = sbr.rel (0) target = $region9
  $region8: #{dlp_forward.5} parent=0 // pred_region
    _
  $region9: #{dlp_forward.5} parent=0 // pred_fallthru
    _
  // Predicated region
  $region10: #{dlp_forward.5} parent=0 // pred_check
    _
  $region11: #{dlp_forward.5} parent=0 // pred_check_branch
    %20 = sbr.rel (0) target = $region13
  $region12: #{dlp_forward.5} parent=0 // pred_region
    _
  $region13: #{dlp_forward.5} parent=0 // pred_fallthru
    _
  // Predicated region
  $region14: #{dlp_forward.5} parent=0 // pred_check
    _
  $region15: #{dlp_forward.5} parent=0 // pred_check_branch
    %22 = sbr.rel (0) target = $region17
  $region16: #{dlp_forward.5} parent=0 // pred_region
    _
  $region17: #{dlp_forward.5} parent=0 // pred_fallthru
    _
  // Predicated region
  $region18: #{dlp_forward.5} parent=0 // pred_check
    _
  $region19: #{dlp_forward.5} parent=0 // pred_check_branch
    %24 = sbr.rel (0) target = $region21
  $region20: #{dlp_forward.5} parent=0 // pred_region
    _
  $region21: #{dlp_forward.5} parent=0 // pred_fallthru
    _
  // Predicated region
  $region22: #{dlp_forward.5} parent=0 // pred_check
    _
  $region23: #{dlp_forward.5} parent=0 // pred_check_branch
    %26 = sbr.rel (0) target = $region25
  $region24: #{dlp_forward.5} parent=0 // pred_region
    _
  $region25: #{dlp_forward.5} parent=0 // pred_fallthru
    _
  // Predicated region
  $region26: #{dlp_forward.5} parent=0 // pred_check
    _
  $region27: #{dlp_forward.5} parent=0 // pred_check_branch
    %28 = sbr.rel (0) target = $region29
  $region28: #{dlp_forward.5} parent=0 // pred_region
    _
  $region29: #{dlp_forward.5} parent=0 // pred_fallthru
    _
  // Predicated region
  $region30: #{dlp_forward.5} parent=0 // pred_check
    _
  $region31: #{dlp_forward.5} parent=0 // pred_check_branch
    %30 = sbr.rel (0) target = $region33
  $region32: #{dlp_forward.5} parent=0 // pred_region
    _
  $region33: #{dlp_forward.5} parent=0 // pred_fallthru
    _
  %v31 = vld [vmem:[%s0] sm:$0xff]
  %v32 = vld [vmem:[%s0 + $0x8] sm:$0xff]
  %v33 = vld [vmem:[%s0 + $0x10] sm:$0xff]
  %v34 = vld [vmem:[%s0 + $0x18] sm:$0xff]
  %v35 = vld [vmem:[%s0 + $0x20] sm:$0xff]
  %v36 = vld [vmem:[%s0 + $0x28] sm:$0xff]
  %v37 = vld [vmem:[%s0 + $0x30] sm:$0xff]
  %v38 = vld [vmem:[%s0 + $0x38] sm:$0xff]
  %v39 = vld [vmem:[%s0 + $0x40] sm:$0xff]
  %v40 = vld [vmem:[%s0 + $0x48] sm:$0xff]
  %v41 = vld [vmem:[%s0 + $0x50] sm:$0xff]
  %v42 = vld [vmem:[%s0 + $0x58] sm:$0xff]
  %v43 = vld [vmem:[%s0 + $0x60] sm:$0xff]
  %v44 = vld [vmem:[%s0 + $0x68] sm:$0xff]
  %v45 = vld [vmem:[%s0 + $0x70] sm:$0xff]
  %v46 = vld [vmem:[%s0 + $0x78] sm:$0xff]
  %v47 = vld [vmem:[%s1] sm:$0xff]
  %v48 = vld [vmem:[%s1 + $0x8] sm:$0xff]
  %v49 = vld [vmem:[%s1 + $0x10] sm:$0xff]
  %v50 = vld [vmem:[%s1 + $0x18] sm:$0xff]
  %v51 = vld [vmem:[%s1 + $0x20] sm:$0xff]
  %v52 = vld [vmem:[%s1 + $0x28] sm:$0xff]
  %v53 = vld [vmem:[%s1 + $0x30] sm:$0xff]
  %v54 = vld [vmem:[%s1 + $0x38] sm:$0xff]
  %v55 = vld [vmem:[%s1 + $0x40] sm:$0xff]
  %v56 = vld [vmem:[%s1 + $0x48] sm:$0xff]
  %v57 = vld [vmem:[%s1 + $0x50] sm:$0xff]
  %v58 = vld [vmem:[%s1 + $0x58] sm:$0xff]
  %v59 = vld [vmem:[%s1 + $0x60] sm:$0xff]
  %v60 = vld [vmem:[%s1 + $0x68] sm:$0xff]
  %v61 = vld [vmem:[%s1 + $0x70] sm:$0xff]
  %v62 = vld [vmem:[%s1 + $0x78] sm:$0xff]
  %v63 = vmul.f32 %v31, %v47
  %v64 = vmul.f32 %v32, %v48
  %v65 = vmul.f32 %v33, %v49
  %v66 = vmul.f32 %v34, %v50
  %v67 = vmul.f32 %v35, %v51
  %v68 = vmul.f32 %v36, %v52
  %v69 = vmul.f32 %v37, %v53
  %v70 = vmul.f32 %v38, %v54
  %v71 = vmul.f32 %v39, %v55
  %v72 = vmul.f32 %v40, %v56
  %v73 = vmul.f32 %v41, %v57
  %v74 = vmul.f32 %v42, %v58
  %v75 = vmul.f32 %v43, %v59
  %v76 = vmul.f32 %v44, %v60
  %v77 = vmul.f32 %v45, %v61
  %v78 = vmul.f32 %v46, %v62
  %v79 = vld [vmem:[%s2] sm:$0xff]
  %v80 = vld [vmem:[%s2 + $0x8] sm:$0xff]
  %v81 = vld [vmem:[%s2 + $0x10] sm:$0xff]
  %v82 = vld [vmem:[%s2 + $0x18] sm:$0xff]
  %v83 = vld [vmem:[%s3] sm:$0x1]
  %v85 = vlaneseq
  %v86 = vshrl.u32 %v85, 7
  %v87 = vsub.s32 0, %v86
  %v88 = vrot.slane %v83, %v87
  %vm90 = vcmask 261120
  %v92 = vsel %vm90, %v63, 0
  %v95 = vsel %vm90, %v64, 0
  %v98 = vsel %vm90, %v65, 0
  %v101 = vsel %vm90, %v66, 0
  %v104 = vsel %vm90, %v67, 0
  %v107 = vsel %vm90, %v68, 0
  %v110 = vsel %vm90, %v69, 0
  %v113 = vsel %vm90, %v70, 0
  %v116 = vsel %vm90, %v71, 0
  %v119 = vsel %vm90, %v72, 0
  %v122 = vsel %vm90, %v73, 0
  %v125 = vsel %vm90, %v74, 0
  %v128 = vsel %vm90, %v75, 0
  %v131 = vsel %vm90, %v76, 0
  %v134 = vsel %vm90, %v77, 0
  %v137 = vsel %vm90, %v78, 0
  %139 = vmatprep.subr.mxu0 0.0
  %140 = vmatpush1.msra.mxu0 0.0
  %141 = vmatprep.subr.mxu0 0.0
  %142 = vmatpush1.msra.mxu0 0.0
  %143 = vmatprep.subr.mxu0 0.0
  %144 = vmatpush1.msra.mxu0 0.0
  %145 = vmatprep.subr.mxu0 0.0
  %146 = vmatpush1.msra.mxu0 0.0
  %147 = vmatprep.subr.mxu0 0.0
  %148 = vmatpush1.msra.mxu0 0.0
  %149 = vmatprep.subr.mxu0 0.0
  %150 = vmatpush1.msra.mxu0 0.0
  %151 = vmatprep.subr.mxu0 0.0
  %152 = vmatpush1.msra.mxu0 0.0
  %153 = vmatprep.subr.mxu0 0.0
  %154 = vmatpush1.msra.mxu0 0.0
  %155 = vmatprep.subr.mxu0 0.0
  %156 = vmatpush1.msra.mxu0 0.0
  %157 = vmatprep.subr.mxu0 0.0
  %158 = vmatpush1.msra.mxu0 0.0
  %159 = vmatprep.subr.mxu0 0.0
  %160 = vmatpush1.msra.mxu0 0.0
  %161 = vmatprep.subr.mxu0 0.0
  %162 = vmatpush1.msra.mxu0 0.0
  %163 = vmatprep.subr.mxu0 0.0
  %164 = vmatpush1.msra.mxu0 %v82
  %165 = vmatprep.subr.mxu0 0.0
  %166 = vmatpush1.msra.mxu0 %v81
  %167 = vmatprep.subr.mxu0 0.0
  %168 = vmatpush1.msra.mxu0 %v80
  %169 = vmatprep.subr.mxu0 0.0
  %170 = vmatpush1.msra.mxu0 %v79
  %171 = vmatprep.subr.mxu0 0.0
  %172 = vmatpush2.msra.mxu0 0.0
  %173 = vmatprep.subr.mxu0 0.0
  %174 = vmatpush2.msra.mxu0 0.0
  %175 = vmatprep.subr.mxu0 0.0
  %176 = vmatpush2.msra.mxu0 0.0
  %177 = vmatprep.subr.mxu0 0.0
  %178 = vmatpush2.msra.mxu0 0.0
  %179 = vmatprep.subr.mxu0 0.0
  %180 = vmatpush2.msra.mxu0 0.0
  %181 = vmatprep.subr.mxu0 0.0
  %182 = vmatpush2.msra.mxu0 0.0
  %183 = vmatprep.subr.mxu0 0.0
  %184 = vmatpush2.msra.mxu0 0.0
  %185 = vmatprep.subr.mxu0 0.0
  %186 = vmatpush2.msra.mxu0 0.0
  %187 = vmatprep.subr.mxu0 0.0
  %188 = vmatpush2.msra.mxu0 0.0
  %189 = vmatprep.subr.mxu0 0.0
  %190 = vmatpush2.msra.mxu0 0.0
  %191 = vmatprep.subr.mxu0 0.0
  %192 = vmatpush2.msra.mxu0 0.0
  %193 = vmatprep.subr.mxu0 0.0
  %194 = vmatpush2.msra.mxu0 0.0
  %195 = vmatprep.subr.mxu0 0.0
  %196 = vmatpush2.msra.mxu0 0.0
  %197 = vmatprep.subr.mxu0 0.0
  %198 = vmatpush2.msra.mxu0 0.0
  %199 = vmatprep.subr.mxu0 0.0
  %200 = vmatpush2.msra.mxu0 0.0
  %201 = vmatprep.subr.mxu0 0.0
  %202 = vmatpush2.msra.mxu0 0.0
  %203 = vmatprep.mubr.f32.mxu0 0.0
  %204 = vmatmul.mubr.f32.gmra.mxu0 %v92
  %v205 = vpop.f32.mrf.mxu0
  %v206 = vadd.f32 %v88, %v205
  %v207 = vpop.f32.mrf.mxu0
  %208 = vmatprep.mubr.f32.mxu0 0.0
  %209 = vmatmul.mubr.f32.gmra.mxu0 %v95
  %v210 = vpop.f32.mrf.mxu0
  %v211 = vadd.f32 %v88, %v210
  %v212 = vpop.f32.mrf.mxu0
  %213 = vmatprep.mubr.f32.mxu0 0.0
  %214 = vmatmul.mubr.f32.gmra.mxu0 %v98
  %v215 = vpop.f32.mrf.mxu0
  %v216 = vadd.f32 %v88, %v215
  %v217 = vpop.f32.mrf.mxu0
  %218 = vmatprep.mubr.f32.mxu0 0.0
  %219 = vmatmul.mubr.f32.gmra.mxu0 %v101
  %v220 = vpop.f32.mrf.mxu0
  %v221 = vadd.f32 %v88, %v220
  %v222 = vpop.f32.mrf.mxu0
  %223 = vmatprep.mubr.f32.mxu0 0.0
  %224 = vmatmul.mubr.f32.gmra.mxu0 %v104
  %v225 = vpop.f32.mrf.mxu0
  %v226 = vadd.f32 %v88, %v225
  %v227 = vpop.f32.mrf.mxu0
  %228 = vmatprep.mubr.f32.mxu0 0.0
  %229 = vmatmul.mubr.f32.gmra.mxu0 %v107
  %v230 = vpop.f32.mrf.mxu0
  %v231 = vadd.f32 %v88, %v230
  %v232 = vpop.f32.mrf.mxu0
  %233 = vmatprep.mubr.f32.mxu0 0.0
  %234 = vmatmul.mubr.f32.gmra.mxu0 %v110
  %v235 = vpop.f32.mrf.mxu0
  %v236 = vadd.f32 %v88, %v235
  %v237 = vpop.f32.mrf.mxu0
  %238 = vmatprep.mubr.f32.mxu0 0.0
  %239 = vmatmul.mubr.f32.gmra.mxu0 %v113
  %v240 = vpop.f32.mrf.mxu0
  %v241 = vadd.f32 %v88, %v240
  %v242 = vpop.f32.mrf.mxu0
  %243 = vmatprep.mubr.f32.mxu0 0.0
  %244 = vmatmul.mubr.f32.gmra.mxu0 %v116
  %v245 = vpop.f32.mrf.mxu0
  %v246 = vadd.f32 %v88, %v245
  %v247 = vpop.f32.mrf.mxu0
  %248 = vmatprep.mubr.f32.mxu0 0.0
  %249 = vmatmul.mubr.f32.gmra.mxu0 %v119
  %v250 = vpop.f32.mrf.mxu0
  %v251 = vadd.f32 %v88, %v250
  %v252 = vpop.f32.mrf.mxu0
  %253 = vmatprep.mubr.f32.mxu0 0.0
  %254 = vmatmul.mubr.f32.gmra.mxu0 %v122
  %v255 = vpop.f32.mrf.mxu0
  %v256 = vadd.f32 %v88, %v255
  %v257 = vpop.f32.mrf.mxu0
  %258 = vmatprep.mubr.f32.mxu0 0.0
  %259 = vmatmul.mubr.f32.gmra.mxu0 %v125
  %v260 = vpop.f32.mrf.mxu0
  %v261 = vadd.f32 %v88, %v260
  %v262 = vpop.f32.mrf.mxu0
  %263 = vmatprep.mubr.f32.mxu0 0.0
  %264 = vmatmul.mubr.f32.gmra.mxu0 %v128
  %v265 = vpop.f32.mrf.mxu0
  %v266 = vadd.f32 %v88, %v265
  %v267 = vpop.f32.mrf.mxu0
  %268 = vmatprep.mubr.f32.mxu0 0.0
  %269 = vmatmul.mubr.f32.gmra.mxu0 %v131
  %v270 = vpop.f32.mrf.mxu0
  %v271 = vadd.f32 %v88, %v270
  %v272 = vpop.f32.mrf.mxu0
  %273 = vmatprep.mubr.f32.mxu0 0.0
  %274 = vmatmul.mubr.f32.gmra.mxu0 %v134
  %v275 = vpop.f32.mrf.mxu0
  %v276 = vadd.f32 %v88, %v275
  %v277 = vpop.f32.mrf.mxu0
  %278 = vmatprep.mubr.f32.mxu0 0.0
  %279 = vmatmul.mubr.f32.gmra.mxu0 %v137
  %v280 = vpop.f32.mrf.mxu0
  %v281 = vadd.f32 %v88, %v280
  %v282 = vpop.f32.mrf.mxu0
  %283 = vdwg.mxu0
  %v284 = vmax.f32 %v206, 0.0
  %v285 = vmax.f32 %v211, 0.0
  %v286 = vmax.f32 %v216, 0.0
  %v287 = vmax.f32 %v221, 0.0
  %v288 = vmax.f32 %v226, 0.0
  %v289 = vmax.f32 %v231, 0.0
  %v290 = vmax.f32 %v236, 0.0
  %v291 = vmax.f32 %v241, 0.0
  %v292 = vmax.f32 %v246, 0.0
  %v293 = vmax.f32 %v251, 0.0
  %v294 = vmax.f32 %v256, 0.0
  %v295 = vmax.f32 %v261, 0.0
  %v296 = vmax.f32 %v266, 0.0
  %v297 = vmax.f32 %v271, 0.0
  %v298 = vmax.f32 %v276, 0.0
  %v299 = vmax.f32 %v281, 0.0
  %v300 = vld [vmem:[%s4] sm:$0xff]
  %v301 = vld [vmem:[%s4 + $0x8] sm:$0xff]
  %v302 = vld [vmem:[%s4 + $0x10] sm:$0xff]
  %v303 = vld [vmem:[%s4 + $0x18] sm:$0xff]
  %v304 = vld [vmem:[%s5] sm:$0x1]
  %v306 = vlaneseq
  %v307 = vshrl.u32 %v306, 7
  %v308 = vsub.s32 0, %v307
  %v309 = vrot.slane %v304, %v308
  %v312 = vsel %vm90, %v284, 0
  %v315 = vsel %vm90, %v285, 0
  %v318 = vsel %vm90, %v286, 0
  %v321 = vsel %vm90, %v287, 0
  %v324 = vsel %vm90, %v288, 0
  %v327 = vsel %vm90, %v289, 0
  %v330 = vsel %vm90, %v290, 0
  %v333 = vsel %vm90, %v291, 0
  %v336 = vsel %vm90, %v292, 0
  %v339 = vsel %vm90, %v293, 0
  %v342 = vsel %vm90, %v294, 0
  %v345 = vsel %vm90, %v295, 0
  %v348 = vsel %vm90, %v296, 0
  %v351 = vsel %vm90, %v297, 0
  %v354 = vsel %vm90, %v298, 0
  %v357 = vsel %vm90, %v299, 0
  %359 = vmatprep.subr.mxu0 0.0
  %360 = vmatpush1.msra.mxu0 0.0
  %361 = vmatprep.subr.mxu0 0.0
  %362 = vmatpush1.msra.mxu0 0.0
  %363 = vmatprep.subr.mxu0 0.0
  %364 = vmatpush1.msra.mxu0 0.0
  %365 = vmatprep.subr.mxu0 0.0
  %366 = vmatpush1.msra.mxu0 0.0
  %367 = vmatprep.subr.mxu0 0.0
  %368 = vmatpush1.msra.mxu0 0.0
  %369 = vmatprep.subr.mxu0 0.0
  %370 = vmatpush1.msra.mxu0 0.0
  %371 = vmatprep.subr.mxu0 0.0
  %372 = vmatpush1.msra.mxu0 0.0
  %373 = vmatprep.subr.mxu0 0.0
  %374 = vmatpush1.msra.mxu0 0.0
  %375 = vmatprep.subr.mxu0 0.0
  %376 = vmatpush1.msra.mxu0 0.0
  %377 = vmatprep.subr.mxu0 0.0
  %378 = vmatpush1.msra.mxu0 0.0
  %379 = vmatprep.subr.mxu0 0.0
  %380 = vmatpush1.msra.mxu0 0.0
  %381 = vmatprep.subr.mxu0 0.0
  %382 = vmatpush1.msra.mxu0 0.0
  %383 = vmatprep.subr.mxu0 0.0
  %384 = vmatpush1.msra.mxu0 %v303
  %385 = vmatprep.subr.mxu0 0.0
  %386 = vmatpush1.msra.mxu0 %v302
  %387 = vmatprep.subr.mxu0 0.0
  %388 = vmatpush1.msra.mxu0 %v301
  %389 = vmatprep.subr.mxu0 0.0
  %390 = vmatpush1.msra.mxu0 %v300
  %391 = vmatprep.subr.mxu0 0.0
  %392 = vmatpush2.msra.mxu0 0.0
  %393 = vmatprep.subr.mxu0 0.0
  %394 = vmatpush2.msra.mxu0 0.0
  %395 = vmatprep.subr.mxu0 0.0
  %396 = vmatpush2.msra.mxu0 0.0
  %397 = vmatprep.subr.mxu0 0.0
  %398 = vmatpush2.msra.mxu0 0.0
  %399 = vmatprep.subr.mxu0 0.0
  %400 = vmatpush2.msra.mxu0 0.0
  %401 = vmatprep.subr.mxu0 0.0
  %402 = vmatpush2.msra.mxu0 0.0
  %403 = vmatprep.subr.mxu0 0.0
  %404 = vmatpush2.msra.mxu0 0.0
  %405 = vmatprep.subr.mxu0 0.0
  %406 = vmatpush2.msra.mxu0 0.0
  %407 = vmatprep.subr.mxu0 0.0
  %408 = vmatpush2.msra.mxu0 0.0
  %409 = vmatprep.subr.mxu0 0.0
  %410 = vmatpush2.msra.mxu0 0.0
  %411 = vmatprep.subr.mxu0 0.0
  %412 = vmatpush2.msra.mxu0 0.0
  %413 = vmatprep.subr.mxu0 0.0
  %414 = vmatpush2.msra.mxu0 0.0
  %415 = vmatprep.subr.mxu0 0.0
  %416 = vmatpush2.msra.mxu0 0.0
  %417 = vmatprep.subr.mxu0 0.0
  %418 = vmatpush2.msra.mxu0 0.0
  %419 = vmatprep.subr.mxu0 0.0
  %420 = vmatpush2.msra.mxu0 0.0
  %421 = vmatprep.subr.mxu0 0.0
  %422 = vmatpush2.msra.mxu0 0.0
  %423 = vmatprep.mubr.f32.mxu0 0.0
  %424 = vmatmul.mubr.f32.gmra.mxu0 %v312
  %v425 = vpop.f32.mrf.mxu0
  %v426 = vadd.f32 %v309, %v425
  %v427 = vpop.f32.mrf.mxu0
  %428 = vmatprep.mubr.f32.mxu0 0.0
  %429 = vmatmul.mubr.f32.gmra.mxu0 %v315
  %v430 = vpop.f32.mrf.mxu0
  %v431 = vadd.f32 %v309, %v430
  %v432 = vpop.f32.mrf.mxu0
  %433 = vmatprep.mubr.f32.mxu0 0.0
  %434 = vmatmul.mubr.f32.gmra.mxu0 %v318
  %v435 = vpop.f32.mrf.mxu0
  %v436 = vadd.f32 %v309, %v435
  %v437 = vpop.f32.mrf.mxu0
  %438 = vmatprep.mubr.f32.mxu0 0.0
  %439 = vmatmul.mubr.f32.gmra.mxu0 %v321
  %v440 = vpop.f32.mrf.mxu0
  %v441 = vadd.f32 %v309, %v440
  %v442 = vpop.f32.mrf.mxu0
  %443 = vmatprep.mubr.f32.mxu0 0.0
  %444 = vmatmul.mubr.f32.gmra.mxu0 %v324
  %v445 = vpop.f32.mrf.mxu0
  %v446 = vadd.f32 %v309, %v445
  %v447 = vpop.f32.mrf.mxu0
  %448 = vmatprep.mubr.f32.mxu0 0.0
  %449 = vmatmul.mubr.f32.gmra.mxu0 %v327
  %v450 = vpop.f32.mrf.mxu0
  %v451 = vadd.f32 %v309, %v450
  %v452 = vpop.f32.mrf.mxu0
  %453 = vmatprep.mubr.f32.mxu0 0.0
  %454 = vmatmul.mubr.f32.gmra.mxu0 %v330
  %v455 = vpop.f32.mrf.mxu0
  %v456 = vadd.f32 %v309, %v455
  %v457 = vpop.f32.mrf.mxu0
  %458 = vmatprep.mubr.f32.mxu0 0.0
  %459 = vmatmul.mubr.f32.gmra.mxu0 %v333
  %v460 = vpop.f32.mrf.mxu0
  %v461 = vadd.f32 %v309, %v460
  %v462 = vpop.f32.mrf.mxu0
  %463 = vmatprep.mubr.f32.mxu0 0.0
  %464 = vmatmul.mubr.f32.gmra.mxu0 %v336
  %v465 = vpop.f32.mrf.mxu0
  %v466 = vadd.f32 %v309, %v465
  %v467 = vpop.f32.mrf.mxu0
  %468 = vmatprep.mubr.f32.mxu0 0.0
  %469 = vmatmul.mubr.f32.gmra.mxu0 %v339
  %v470 = vpop.f32.mrf.mxu0
  %v471 = vadd.f32 %v309, %v470
  %v472 = vpop.f32.mrf.mxu0
  %473 = vmatprep.mubr.f32.mxu0 0.0
  %474 = vmatmul.mubr.f32.gmra.mxu0 %v342
  %v475 = vpop.f32.mrf.mxu0
  %v476 = vadd.f32 %v309, %v475
  %v477 = vpop.f32.mrf.mxu0
  %478 = vmatprep.mubr.f32.mxu0 0.0
  %479 = vmatmul.mubr.f32.gmra.mxu0 %v345
  %v480 = vpop.f32.mrf.mxu0
  %v481 = vadd.f32 %v309, %v480
  %v482 = vpop.f32.mrf.mxu0
  %483 = vmatprep.mubr.f32.mxu0 0.0
  %484 = vmatmul.mubr.f32.gmra.mxu0 %v348
  %v485 = vpop.f32.mrf.mxu0
  %v486 = vadd.f32 %v309, %v485
  %v487 = vpop.f32.mrf.mxu0
  %488 = vmatprep.mubr.f32.mxu0 0.0
  %489 = vmatmul.mubr.f32.gmra.mxu0 %v351
  %v490 = vpop.f32.mrf.mxu0
  %v491 = vadd.f32 %v309, %v490
  %v492 = vpop.f32.mrf.mxu0
  %493 = vmatprep.mubr.f32.mxu0 0.0
  %494 = vmatmul.mubr.f32.gmra.mxu0 %v354
  %v495 = vpop.f32.mrf.mxu0
  %v496 = vadd.f32 %v309, %v495
  %v497 = vpop.f32.mrf.mxu0
  %498 = vmatprep.mubr.f32.mxu0 0.0
  %499 = vmatmul.mubr.f32.gmra.mxu0 %v357
  %v500 = vpop.f32.mrf.mxu0
  %v501 = vadd.f32 %v309, %v500
  %v502 = vpop.f32.mrf.mxu0
  %503 = vdwg.mxu0
  %v504 = vmax.f32 %v426, 0.0
  %v505 = vmax.f32 %v431, 0.0
  %v506 = vmax.f32 %v436, 0.0
  %v507 = vmax.f32 %v441, 0.0
  %v508 = vmax.f32 %v446, 0.0
  %v509 = vmax.f32 %v451, 0.0
  %v510 = vmax.f32 %v456, 0.0
  %v511 = vmax.f32 %v461, 0.0
  %v512 = vmax.f32 %v466, 0.0
  %v513 = vmax.f32 %v471, 0.0
  %v514 = vmax.f32 %v476, 0.0
  %v515 = vmax.f32 %v481, 0.0
  %v516 = vmax.f32 %v486, 0.0
  %v517 = vmax.f32 %v491, 0.0
  %v518 = vmax.f32 %v496, 0.0
  %v519 = vmax.f32 %v501, 0.0
  %v520 = vld [vmem:[%s6] sm:$0x1]
  %v521 = vld [vmem:[#allocation2] sm:$0x1]
  %523 = vset.pattern.permute.xlu0 0
  %524 = vperm.xlu0 %523, %v521
  %v525 = vpop.permute.xlu0 %524
  %v527 = vlaneseq
  %v528 = vshrl.u32 %v527, 7
  %v529 = vsub.s32 0, %v528
  %v530 = vrot.slane %v525, %v529
  %v532 = vsel %vm90, %v520, 0
  %v535 = vsel %vm90, %v504, 0
  %v538 = vsel %vm90, %v505, 0
  %v541 = vsel %vm90, %v506, 0
  %v544 = vsel %vm90, %v507, 0
  %v547 = vsel %vm90, %v508, 0
  %v550 = vsel %vm90, %v509, 0
  %v553 = vsel %vm90, %v510, 0
  %v556 = vsel %vm90, %v511, 0
  %v559 = vsel %vm90, %v512, 0
  %v562 = vsel %vm90, %v513, 0
  %v565 = vsel %vm90, %v514, 0
  %v568 = vsel %vm90, %v515, 0
  %v571 = vsel %vm90, %v516, 0
  %v574 = vsel %vm90, %v517, 0
  %v577 = vsel %vm90, %v518, 0
  %v580 = vsel %vm90, %v519, 0
  %582 = vmatprep.subr.mxu0 0.0
  %583 = vmatpush1.xpose.msra.mxu0 %v580
  %584 = vmatprep.subr.mxu0 0.0
  %585 = vmatpush1.xpose.msra.mxu0 %v577
  %586 = vmatprep.subr.mxu0 0.0
  %587 = vmatpush1.xpose.msra.mxu0 %v574
  %588 = vmatprep.subr.mxu0 0.0
  %589 = vmatpush1.xpose.msra.mxu0 %v571
  %590 = vmatprep.subr.mxu0 0.0
  %591 = vmatpush1.xpose.msra.mxu0 %v568
  %592 = vmatprep.subr.mxu0 0.0
  %593 = vmatpush1.xpose.msra.mxu0 %v565
  %594 = vmatprep.subr.mxu0 0.0
  %595 = vmatpush1.xpose.msra.mxu0 %v562
  %596 = vmatprep.subr.mxu0 0.0
  %597 = vmatpush1.xpose.msra.mxu0 %v559
  %598 = vmatprep.subr.mxu0 0.0
  %599 = vmatpush1.xpose.msra.mxu0 %v556
  %600 = vmatprep.subr.mxu0 0.0
  %601 = vmatpush1.xpose.msra.mxu0 %v553
  %602 = vmatprep.subr.mxu0 0.0
  %603 = vmatpush1.xpose.msra.mxu0 %v550
  %604 = vmatprep.subr.mxu0 0.0
  %605 = vmatpush1.xpose.msra.mxu0 %v547
  %606 = vmatprep.subr.mxu0 0.0
  %607 = vmatpush1.xpose.msra.mxu0 %v544
  %608 = vmatprep.subr.mxu0 0.0
  %609 = vmatpush1.xpose.msra.mxu0 %v541
  %610 = vmatprep.subr.mxu0 0.0
  %611 = vmatpush1.xpose.msra.mxu0 %v538
  %612 = vmatprep.subr.mxu0 0.0
  %613 = vmatpush1.xpose.msra.mxu0 %v535
  %614 = vmatprep.subr.mxu0 0.0
  %615 = vmatpush2.xpose.msra.mxu0 0.0
  %616 = vmatprep.subr.mxu0 0.0
  %617 = vmatpush2.xpose.msra.mxu0 0.0
  %618 = vmatprep.subr.mxu0 0.0
  %619 = vmatpush2.xpose.msra.mxu0 0.0
  %620 = vmatprep.subr.mxu0 0.0
  %621 = vmatpush2.xpose.msra.mxu0 0.0
  %622 = vmatprep.subr.mxu0 0.0
  %623 = vmatpush2.xpose.msra.mxu0 0.0
  %624 = vmatprep.subr.mxu0 0.0
  %625 = vmatpush2.xpose.msra.mxu0 0.0
  %626 = vmatprep.subr.mxu0 0.0
  %627 = vmatpush2.xpose.msra.mxu0 0.0
  %628 = vmatprep.subr.mxu0 0.0
  %629 = vmatpush2.xpose.msra.mxu0 0.0
  %630 = vmatprep.subr.mxu0 0.0
  %631 = vmatpush2.xpose.msra.mxu0 0.0
  %632 = vmatprep.subr.mxu0 0.0
  %633 = vmatpush2.xpose.msra.mxu0 0.0
  %634 = vmatprep.subr.mxu0 0.0
  %635 = vmatpush2.xpose.msra.mxu0 0.0
  %636 = vmatprep.subr.mxu0 0.0
  %637 = vmatpush2.xpose.msra.mxu0 0.0
  %638 = vmatprep.subr.mxu0 0.0
  %639 = vmatpush2.xpose.msra.mxu0 0.0
  %640 = vmatprep.subr.mxu0 0.0
  %641 = vmatpush2.xpose.msra.mxu0 0.0
  %642 = vmatprep.subr.mxu0 0.0
  %643 = vmatpush2.xpose.msra.mxu0 0.0
  %644 = vmatprep.subr.mxu0 0.0
  %645 = vmatpush2.xpose.msra.mxu0 0.0
  %646 = vmatprep.mubr.f32.mxu0 0.0
  %647 = vmatmul.mubr.f32.gmra.mxu0 %v532
  %v648 = vpop.f32.mrf.mxu0
  %v649 = vadd.f32 %v530, %v648
  %v650 = vpop.f32.mrf.mxu0
  %651 = vdwg.mxu0
  %652 = vst [vmem:[%s8] sm:$0x1] %v649
  // Predicated region
  $region34: #{dlp_forward.5} parent=0 // pred_check
    _
  $region35: #{dlp_forward.5} parent=0 // pred_check_branch
    %654 = sbr.rel (0) target = $region37
  $region36: #{dlp_forward.5} parent=0 // pred_region
    _
  $region37: #{dlp_forward.5} parent=0 // pred_fallthru
    _
  // Predicated region
  $region38: #{dlp_forward.5} parent=0 // pred_check
    _
  $region39: #{dlp_forward.5} parent=0 // pred_check_branch
    %656 = sbr.rel (0) target = $region41
  $region40: #{dlp_forward.5} parent=0 // pred_region
    _
  $region41: #{dlp_forward.5} parent=0 // pred_fallthru
    _

</llo_original>
